<compile_context>
chip_gen: v7x
topology: tpu7x:2x2x1
jax: 0.10.0
libtpu: 0.0.40
codegen_flags: <defaults>
</compile_context>

<pallas_src>
import math
import functools

import jax
import jax.numpy as jnp
from jax.experimental import pallas as pl
from jax.experimental.pallas import tpu as pltpu


def _round_up(v, m):
    return (v + m - 1) // m * m


def _maybe_pad(a, pads):
    if all(lo == 0 and hi == 0 for lo, hi in pads):
        return a
    return jnp.pad(a, pads)


def _vmem_capacity_bytes():
    try:
        cap = getattr(pltpu.get_tpu_info(), "vmem_capacity_bytes", None)
        if cap:
            return int(cap)
    except Exception:
        pass
    return 64 * 1024 * 1024  # conservative default (v7x per-TensorCore VMEM)


# ---------------- small row-tiled matmul: out[i] = lhs[i,:] @ W -------------
def _row_matmul_kernel(lhs_ref, w_ref, out_ref):
    out_ref[...] = jnp.dot(
        lhs_ref[...], w_ref[...], preferred_element_type=jnp.float32
    ).astype(out_ref.dtype)


def _row_matmul(lhs, w, out_dtype, tile_m, vmem_cap):
    n_rows, f_in = lhs.shape
    f_out = w.shape[1]
    lb, wb = lhs.dtype.itemsize, w.dtype.itemsize
    ob = jnp.dtype(out_dtype).itemsize
    budget = int(vmem_cap * 0.7)

    def ws(tm):  # double-buffered working set estimate
        return 2 * tm * f_in * lb + 2 * f_in * f_out * wb + 2 * tm * f_out * ob

    while ws(tile_m) > budget and tile_m >= 16 and (tile_m // 2) % 8 == 0:
        tile_m //= 2
    # TODO(synk): K-tile this matmul if the (f_in x f_out) weight block alone
    # exceeds VMEM (feature dims in the many thousands).
    vmem_limit = int(min(int(vmem_cap * 0.9), max(ws(tile_m) + (8 << 20), 32 << 20)))

    return pl.pallas_call(
        _row_matmul_kernel,
        out_shape=jax.ShapeDtypeStruct((n_rows, f_out), out_dtype),
        grid_spec=pltpu.PrefetchScalarGridSpec(
            num_scalar_prefetch=0,
            grid=(n_rows // tile_m,),
            in_specs=[
                pl.BlockSpec((tile_m, f_in), lambda i: (i, 0)),
                pl.BlockSpec((f_in, f_out), lambda i: (0, 0)),  # weight resident
            ],
            out_specs=pl.BlockSpec((tile_m, f_out), lambda i: (i, 0)),
        ),
        compiler_params=pltpu.CompilerParams(
            dimension_semantics=("parallel",),
            vmem_limit_bytes=vmem_limit,
        ),
    )(lhs, w)


# ---------------- big streaming matmul: out = adj @ rhs ---------------------
def _adj_matmul_kernel(adj_ref, rhs_ref, out_ref, *acc, rhs_resident, tile_k):
    k = pl.program_id(1)
    acc_ref = acc[0] if acc else out_ref  # f32 output -> accumulate in place

    @pl.when(k == 0)
    def _():
        acc_ref[...] = jnp.zeros_like(acc_ref)

    if rhs_resident:
        start = pl.multiple_of(k * tile_k, 128)
        rhs_blk = rhs_ref[pl.ds(start, tile_k), :]
    else:
        rhs_blk = rhs_ref[...]

    acc_ref[...] += jnp.dot(adj_ref[...], rhs_blk, preferred_element_type=jnp.float32)

    if acc:
        @pl.when(k == pl.num_programs(1) - 1)
        def _():
            out_ref[...] = acc_ref[...].astype(out_ref.dtype)


def _adj_matmul(adj_p, rhs, out_dtype, tile_n, tile_k, vmem_cap):
    n_pad = adj_p.shape[0]
    f_p = rhs.shape[1]
    ab, rb = adj_p.dtype.itemsize, rhs.dtype.itemsize
    ob = jnp.dtype(out_dtype).itemsize
    acc_needed = jnp.dtype(out_dtype) != jnp.dtype(jnp.float32)
    budget = int(vmem_cap * 0.7)

    def ws(tn, tk, resident):
        s = 2 * tn * tk * ab + 2 * tn * f_p * ob
        s += (2 * n_pad * f_p * rb) if resident else (2 * tk * f_p * rb)
        if acc_needed:
            s += tn * f_p * 4
        return s

    # Shrink tiles if the streamed-RHS working set doesn't fit the budget
    # (halving an even divisor of n_pad keeps divisibility).
    while ws(tile_n, tile_k, False) > budget:
        if tile_k >= 256 and (tile_k // 2) % 128 == 0:
            tile_k //= 2
        elif tile_n >= 16 and (tile_n // 2) % 8 == 0:
            tile_n //= 2
        else:
            break

    # Keep the whole RHS VMEM-resident when it fits: DMA'd once instead of
    # re-streamed once per row tile.
    rhs_resident = ws(tile_n, tile_k, True) <= budget
    working = ws(tile_n, tile_k, rhs_resident)
    vmem_limit = int(min(int(vmem_cap * 0.9), max(working + (8 << 20), 32 << 20)))

    if rhs_resident:
        rhs_spec = pl.BlockSpec((n_pad, f_p), lambda i, k: (0, 0))
    else:
        rhs_spec = pl.BlockSpec((tile_k, f_p), lambda i, k: (k, 0))

    scratch = [pltpu.VMEM((tile_n, f_p), jnp.float32)] if acc_needed else []

    return pl.pallas_call(
        functools.partial(
            _adj_matmul_kernel, rhs_resident=rhs_resident, tile_k=tile_k
        ),
        out_shape=jax.ShapeDtypeStruct((n_pad, f_p), out_dtype),
        grid_spec=pltpu.PrefetchScalarGridSpec(
            num_scalar_prefetch=0,
            grid=(n_pad // tile_n, n_pad // tile_k),
            in_specs=[
                pl.BlockSpec((tile_n, tile_k), lambda i, k: (i, k)),  # adj stream
                rhs_spec,
            ],
            out_specs=pl.BlockSpec((tile_n, f_p), lambda i, k: (i, 0)),
            scratch_shapes=scratch,
        ),
        compiler_params=pltpu.CompilerParams(
            dimension_semantics=("parallel", "arbitrary"),
            vmem_limit_bytes=vmem_limit,
        ),
    )(adj_p, rhs)


@functools.partial(
    jax.jit, static_argnames=("tile_n", "tile_k", "cast_adj_to_bf16")
)
def graph_convolution(x, adj, weight, *, tile_n=512, tile_k=1024,
                      cast_adj_to_bf16=False):
    """res = adj @ (x @ weight); matches PyTorch GraphConvolution.forward."""
    n_nodes, n_input = x.shape
    assert weight.shape[0] == n_input
    n_output = weight.shape[1]
    assert adj.shape == (n_nodes, n_nodes)
    assert tile_n % 8 == 0 and tile_k % 128 == 0
    out_dtype = x.dtype

    vmem_cap = _vmem_capacity_bytes()

    # --- node padding / tile selection ---
    n_pad0 = _round_up(n_nodes, 128)
    tile_n = min(tile_n, n_pad0)
    tile_k = min(tile_k, n_pad0)
    if n_pad0 // tile_n < 2:      # keep >= 2 row tiles so both v7x TCs get work
        tile_n = n_pad0 // 2      # multiple of 64 -> sublane-aligned
    lcm = tile_n * tile_k // math.gcd(tile_n, tile_k)
    n_pad_lcm = _round_up(n_pad0, lcm)
    if n_pad_lcm * 8 > n_pad0 * 9:   # >12.5% extra rows: shrink tiles, not adj
        tile_n = math.gcd(tile_n, n_pad0)
        tile_k = math.gcd(tile_k, n_pad0)
        n_pad = n_pad0
    else:
        n_pad = n_pad_lcm

    # lane-dense (128-multiple) feature widths
    n_in_p = _round_up(n_input, 128)
    n_out_p = _round_up(n_output, 128)

    adj_c = adj.astype(jnp.bfloat16) if cast_adj_to_bf16 else adj
    # TODO(synk): mask ragged node tails in-kernel to avoid this O(N^2) pad
    # copy when N is not tile-aligned.
    adj_p = _maybe_pad(adj_c, ((0, n_pad - n_nodes), (0, n_pad - n_nodes)))

    inter_dtype = x.dtype  # intermediate stays in the input dtype (bf16-friendly)

    if n_out_p <= n_in_p:
        # order 1: XW = x @ W, then adj @ XW   (big-matmul RHS width = n_out_p)
        x_p = _maybe_pad(x, ((0, n_pad - n_nodes), (0, 0)))
        w_p = _maybe_pad(weight, ((0, 0), (0, n_out_p - n_output)))
        xw = _row_matmul(x_p, w_p, inter_dtype, tile_n, vmem_cap)
        out_p = _adj_matmul(adj_p, xw, out_dtype, tile_n, tile_k, vmem_cap)
    else:
        # order 2: AX = adj @ x, then AX @ W   (big-matmul RHS width = n_in_p)
        x_p = _maybe_pad(x, ((0, n_pad - n_nodes), (0, n_in_p - n_input)))
        w_p = _maybe_pad(weight, ((0, n_in_p - n_input), (0, n_out_p - n_output)))
        ax = _adj_matmul(adj_p, x_p, inter_dtype, tile_n, tile_k, vmem_cap)
        out_p = _row_matmul(ax, w_p, out_dtype, tile_n, vmem_cap)

    return out_p[:n_nodes, :n_output]


def init_weight(key, n_input, n_output, dtype=jnp.float32):
    # Matches reset_parameters(): uniform(-stdv, stdv), stdv = 1/sqrt(n_input)
    stdv = 1.0 / math.sqrt(n_input)
    return jax.random.uniform(
        key, (n_input, n_output), dtype=dtype, minval=-stdv, maxval=stdv
    )


if __name__ == "__main__":
    n_nodes, n_input, n_output = 128, 32, 32

    key = jax.random.PRNGKey(0)
    k_x, k_adj, k_w = jax.random.split(key, 3)

    x = jax.random.normal(k_x, (n_nodes, n_input), dtype=jnp.float32)
    # Dense (row-normalized-ish) adjacency; semantics only need a dense matmul.
    adj = jax.random.uniform(k_adj, (n_nodes, n_nodes), dtype=jnp.float32)
    adj = adj / jnp.sum(adj, axis=-1, keepdims=True)
    weight = init_weight(k_w, n_input, n_output)

    out = graph_convolution(x, adj, weight)
    out = jax.block_until_ready(out)

    # Cross-check against plain JAX reference of the PyTorch forward.
    ref = adj @ (x @ weight)
    assert out.shape == (n_nodes, n_output)
    assert jnp.allclose(out, ref, atol=1e-4, rtol=1e-4)

    print("KERNEL_OK")
</pallas_src>

<mosaic_0001>
module attributes {stable_mosaic.version = 11 : i64} {
  func.func @_adj_matmul_kernel(%arg0: i32, %arg1: i32, %arg2: memref<64x128xf32, #tpu.memory_space<vmem>>, %arg3: memref<128x128xf32, #tpu.memory_space<vmem>>, %arg4: memref<64x128xf32, #tpu.memory_space<vmem>>) attributes {dimension_semantics = [#tpu.dimension_semantics<parallel>, #tpu.dimension_semantics<arbitrary>], iteration_bounds = array<i64: 2, 1>, scalar_prefetch = 0 : i64, scratch_operands = 0 : i64, tpu.core_type = #tpu.core_type<tc>, window_params = [{transform_indices = @transform_0, window_bounds = array<i64: 64, 128>}, {pipeline_mode = #tpu.pipeline_mode<synchronous>, transform_indices = @transform_1, window_bounds = array<i64: 128, 128>}, {transform_indices = @transform_2, window_bounds = array<i64: 64, 128>}]} {
    %c0_i32 = arith.constant 0 : i32
    %0 = arith.cmpi eq, %arg1, %c0_i32 : i32
    %1 = arith.extui %0 : i1 to i32
    %c0_i32_0 = arith.constant 0 : i32
    %2 = arith.cmpi ne, %1, %c0_i32_0 : i32
    scf.if %2 {
      %cst_7 = arith.constant 0.000000e+00 : f32
      %12 = vector.broadcast %cst_7 : f32 to vector<64x128xf32>
      %c0_8 = arith.constant 0 : index
      %c0_9 = arith.constant 0 : index
      %13 = vector.load %arg4[%c0_8, %c0_9] : memref<64x128xf32, #tpu.memory_space<vmem>>, vector<64x128xf32>
      tpu.vector_store %arg4[%c0_8, %c0_9], %12 {strides = array<i32>} : memref<64x128xf32, #tpu.memory_space<vmem>>, vector<64x128xf32>,
    } else {
    }
    %c128_i32 = arith.constant 128 : i32
    %3 = arith.muli %arg1, %c128_i32 : i32
    %4 = tpu.assume_multiple %3, 128 : i32
    %5 = arith.index_cast %4 : i32 to index
    %c0 = arith.constant 0 : index
    %6 = vector.load %arg3[%5, %c0] : memref<128x128xf32, #tpu.memory_space<vmem>>, vector<128x128xf32>
    %c0_1 = arith.constant 0 : index
    %c0_2 = arith.constant 0 : index
    %7 = vector.load %arg4[%c0_1, %c0_2] : memref<64x128xf32, #tpu.memory_space<vmem>>, vector<64x128xf32>
    %c0_3 = arith.constant 0 : index
    %c0_4 = arith.constant 0 : index
    %8 = vector.load %arg2[%c0_3, %c0_4] : memref<64x128xf32, #tpu.memory_space<vmem>>, vector<64x128xf32>
    %cst = arith.constant dense<0.000000e+00> : vector<64x128xf32>
    %9 = tpu.matmul %8, %6, %cst {dimension_numbers = #tpu.dot_dimension_numbers<[1], [0], [0], [1], [0, 0, 1, 1], [], []>} : vector<64x128xf32>, vector<128x128xf32>, vector<64x128xf32> -> vector<64x128xf32>
    %10 = arith.addf %7, %9 : vector<64x128xf32>
    %c0_5 = arith.constant 0 : index
    %c0_6 = arith.constant 0 : index
    %11 = vector.load %arg4[%c0_5, %c0_6] : memref<64x128xf32, #tpu.memory_space<vmem>>, vector<64x128xf32>
    tpu.vector_store %arg4[%c0_5, %c0_6], %10 {strides = array<i32>} : memref<64x128xf32, #tpu.memory_space<vmem>>, vector<64x128xf32>,
    return
  }
  func.func @transform_0(%arg0: i32, %arg1: i32) -> (i32, i32) {
    %c0_i32 = arith.constant 0 : i32
    return %arg0, %arg1 : i32, i32
  }
  func.func @transform_1(%arg0: i32, %arg1: i32) -> (i32, i32) {
    %c0_i32 = arith.constant 0 : i32
    %c0_i32_0 = arith.constant 0 : i32
    %c0_i32_1 = arith.constant 0 : i32
    return %c0_i32, %c0_i32_0 : i32, i32
  }
  func.func @transform_2(%arg0: i32, %arg1: i32) -> (i32, i32) {
    %c0_i32 = arith.constant 0 : i32
    %c0_i32_0 = arith.constant 0 : i32
    return %arg0, %c0_i32 : i32, i32
  }
}

module attributes {stable_mosaic.version = 11 : i64} {
  func.func @_row_matmul_kernel(%arg0: i32, %arg1: memref<64x32xf32, #tpu.memory_space<vmem>>, %arg2: memref<32x128xf32, #tpu.memory_space<vmem>>, %arg3: memref<64x128xf32, #tpu.memory_space<vmem>>) attributes {dimension_semantics = [#tpu.dimension_semantics<parallel>], iteration_bounds = array<i64: 2>, scalar_prefetch = 0 : i64, scratch_operands = 0 : i64, tpu.core_type = #tpu.core_type<tc>, window_params = [{transform_indices = @transform_0, window_bounds = array<i64: 64, 32>}, {pipeline_mode = #tpu.pipeline_mode<synchronous>, transform_indices = @transform_1, window_bounds = array<i64: 32, 128>}, {transform_indices = @transform_2, window_bounds = array<i64: 64, 128>}]} {
    %c0 = arith.constant 0 : index
    %c0_0 = arith.constant 0 : index
    %0 = vector.load %arg1[%c0, %c0_0] : memref<64x32xf32, #tpu.memory_space<vmem>>, vector<64x32xf32>
    %c0_1 = arith.constant 0 : index
    %c0_2 = arith.constant 0 : index
    %1 = vector.load %arg2[%c0_1, %c0_2] : memref<32x128xf32, #tpu.memory_space<vmem>>, vector<32x128xf32>
    %cst = arith.constant dense<0.000000e+00> : vector<64x128xf32>
    %2 = tpu.matmul %0, %1, %cst {dimension_numbers = #tpu.dot_dimension_numbers<[1], [0], [0], [1], [0, 0, 1, 1], [], []>} : vector<64x32xf32>, vector<32x128xf32>, vector<64x128xf32> -> vector<64x128xf32>
    %c0_3 = arith.constant 0 : index
    %c0_4 = arith.constant 0 : index
    %3 = vector.load %arg3[%c0_3, %c0_4] : memref<64x128xf32, #tpu.memory_space<vmem>>, vector<64x128xf32>
    tpu.vector_store %arg3[%c0_3, %c0_4], %2 {strides = array<i32>} : memref<64x128xf32, #tpu.memory_space<vmem>>, vector<64x128xf32>,
    return
  }
  func.func @transform_0(%arg0: i32) -> (i32, i32) {
    %c0_i32 = arith.constant 0 : i32
    %c0_i32_0 = arith.constant 0 : i32
    return %arg0, %c0_i32 : i32, i32
  }
  func.func @transform_1(%arg0: i32) -> (i32, i32) {
    %c0_i32 = arith.constant 0 : i32
    %c0_i32_0 = arith.constant 0 : i32
    %c0_i32_1 = arith.constant 0 : i32
    return %c0_i32, %c0_i32_0 : i32, i32
  }
  func.func @transform_2(%arg0: i32) -> (i32, i32) {
    %c0_i32 = arith.constant 0 : i32
    %c0_i32_0 = arith.constant 0 : i32
    return %arg0, %c0_i32 : i32, i32
  }
}

</mosaic_0001>

<llo_original>
// kernel: graph_convolution.3
$region0: #{graph_convolution.3}
  #allocation0 [shape = 'u32[]', space=smem, size = 0x4, offset = 0x4, fixed_abs, tag = 'smem constant byte address 0x4 - core index']
  #allocation1 [shape = 'u32[144,128]{1,0:T(1,128)}', space=vmem, size = 0x12000, scoped, tag = 'internal scratch']
  %s0 = inlined_call_operand.vmem [shape: f32[128,128], index: 0, kind: input, shape index: {}]
  %s1 = inlined_call_operand.vmem [shape: f32[128,128], index: 1, kind: input, shape index: {}]
  %s2 = inlined_call_operand.vmem [shape: f32[128,128], index: 2, kind: output, shape index: {}]
  %s3 = sld [smem:[#allocation0]]
  $region45: #{graph_convolution.3} parent=0
    _
  %s5 = ssub.s32 1, %s3
  %s6 = scalar_select 0, %s5, %s3
  loop: start=0, step=1, limit=4
  $region2: #{graph_convolution.3} parent=0 // loop_pre_header
    _
  $region3: #{graph_convolution.3} parent=0 // loop_header
    %s8 = sphi 0, %s12
    %p9 = scmp.ge.s32.totalorder %s8, 4
    %s15 = sphi 0, %s27
    %s16 = sphi 0, %s23
    %s17 = sphi 0, %s15
    %s18 = sphi 0, %s16
    %s19 = sphi 0, %s17
    %s20 = sphi 0, %s18
    %s32 = sphi 0, %s34
    %s35 = sphi 0, %s32
    %s36 = sphi 0, %s35
    %s52 = sphi 0, %s36
    %s56 = sphi 0, %s56
    %s58 = sphi 0, %s56
    %s59 = sphi 0, %s58
    %s73 = sphi 0, %s59
    %s79 = sphi 0, %s81
    %s82 = sphi 0, %s79
    %s83 = sphi 0, %s82
    %s99 = sphi 0, %s83
  $region4: #{graph_convolution.3} parent=0 // loop_header_branch
    %11 = sbr.rel (%p9) target = $region8
  $region5: #{graph_convolution.3} parent=0 // loop_body
    %s13 = ssub.s32 %s8, 1
    %s14 = ssub.s32 %s8, 2
    %s21 = sadd.s32 1, %s16
    %p22 = scmp.ge.s32.totalorder %s21, 1
    %s23 = scalar_select %p22, 0, %s21
    %s24 = sadd.s32 1, %s15
    %s25 = scalar_select %p22, %s24, %s15
    %p26 = scmp.ge.s32.totalorder %s25, 2
    %s27 = scalar_select %p26, 0, %s25
    %s28 = ssub.s32 %s15, %s27
    %s29 = ssub.s32 %s16, %s23
    %s30 = sor.u32 %s28, %s29
    %p31 = scmp.eq.s32.totalorder %s30, 0
    %s33 = sadd.s32 %s32, 1
    %s34 = scalar_select %p31, %s32, %s33
    %p37 = pneg %p31
    %p38 = scmp.eq.s32.totalorder %s8, 1
    %p39 = por %p37, %p38
    %p40 = scmp.ne.s32.totalorder %s32, %s35
    %p41 = scmp.eq.s32.totalorder %s8, 0
    %p42 = por %p40, %p41
    %p43 = scmp.ne.s32.totalorder %s32, %s35
    %p44 = scmp.eq.s32.totalorder %s13, 1
    %p45 = por %p43, %p44
    %p46 = scmp.ne.s32.totalorder %s35, %s36
    %p47 = scmp.eq.s32.totalorder %s13, 0
    %p48 = por %p46, %p47
    %p49 = scmp.ne.s32.totalorder %s35, %s36
    %p50 = scmp.eq.s32.totalorder %s14, 1
    %p51 = por %p49, %p50
    %p53 = scmp.ne.s32.totalorder %s36, %s52
    %p54 = scmp.eq.s32.totalorder %s14, 0
    %p55 = por %p53, %p54
    %s57 = sadd.s32 %s56, 1
    %p60 = scmp.eq.s32.totalorder %s8, 1
    %p61 = scmp.ne.s32.totalorder %s56, %s58
    %p62 = scmp.eq.s32.totalorder %s8, 0
    %p63 = por %p61, %p62
    %p64 = scmp.ne.s32.totalorder %s56, %s58
    %p65 = scmp.eq.s32.totalorder %s13, 1
    %p66 = por %p64, %p65
    %p67 = scmp.ne.s32.totalorder %s58, %s59
    %p68 = scmp.eq.s32.totalorder %s13, 0
    %p69 = por %p67, %p68
    %p70 = scmp.ne.s32.totalorder %s58, %s59
    %p71 = scmp.eq.s32.totalorder %s14, 1
    %p72 = por %p70, %p71
    %p74 = scmp.ne.s32.totalorder %s59, %s73
    %p75 = scmp.eq.s32.totalorder %s14, 0
    %p76 = por %p74, %p75
    %s77 = ssub.s32 %s15, %s27
    %p78 = scmp.eq.s32.totalorder %s77, 0
    %s80 = sadd.s32 %s79, 1
    %s81 = scalar_select %p78, %s79, %s80
    %p84 = pneg %p78
    %p85 = scmp.eq.s32.totalorder %s8, 1
    %p86 = por %p84, %p85
    %p87 = scmp.ne.s32.totalorder %s79, %s82
    %p88 = scmp.eq.s32.totalorder %s8, 0
    %p89 = por %p87, %p88
    %p90 = scmp.ne.s32.totalorder %s79, %s82
    %p91 = scmp.eq.s32.totalorder %s13, 1
    %p92 = por %p90, %p91
    %p93 = scmp.ne.s32.totalorder %s82, %s83
    %p94 = scmp.eq.s32.totalorder %s13, 0
    %p95 = por %p93, %p94
    %p96 = scmp.ne.s32.totalorder %s82, %s83
    %p97 = scmp.eq.s32.totalorder %s14, 1
    %p98 = por %p96, %p97
    %p100 = scmp.ne.s32.totalorder %s83, %s99
    %p101 = scmp.eq.s32.totalorder %s14, 0
    %p102 = por %p100, %p101
    %p103 = scmp.le.s32.totalorder 1, %s8
    %p104 = scmp.lt.s32.totalorder %s8, 3
    %p105 = pnand %p103, %p104
    %p106 = pneg %p105
    // Predicated region
    $region9: #{graph_convolution.3} parent=5 // pred_check
      _
    $region10: #{graph_convolution.3} parent=5 // pred_check_branch
      %108 = sbr.rel (%p105) target = $region12
    $region11: #{graph_convolution.3} parent=5 // pred_region
      %s109 = ssub.s32 %s8, 1
      // Predicated region
      $region13: #{graph_convolution.3} parent=11 // pred_check
        %p110 = pneg %p69
      $region14: #{graph_convolution.3} parent=11 // pred_check_branch
        %112 = sbr.rel (%p110) target = $region16
      $region15: #{graph_convolution.3} parent=11 // pred_region
        _
      $region16: #{graph_convolution.3} parent=11 // pred_fallthru
        _
    $region12: #{graph_convolution.3} parent=5 // pred_fallthru
      _
    %p113 = scmp.lt.s32.totalorder %s8, 2
    // Predicated region
    $region17: #{graph_convolution.3} parent=5 // pred_check
      %p114 = pneg %p113
    $region18: #{graph_convolution.3} parent=5 // pred_check_branch
      %116 = sbr.rel (%p114) target = $region20
    $region19: #{graph_convolution.3} parent=5 // pred_region
      // Predicated region
      $region21: #{graph_convolution.3} parent=19 // pred_check
        %p117 = pneg %p42
      $region22: #{graph_convolution.3} parent=19 // pred_check_branch
        %119 = sbr.rel (%p117) target = $region24
      $region23: #{graph_convolution.3} parent=19 // pred_region
        %s120 = smul.u32 8, %s15
        %p121 = scmp.lt.s32.totalorder %s120, 15
        %s122 = scalar_select %p121, %s120, 15
        %p123 = scmp.lt.s32.totalorder %s16, 0
        %s124 = scalar_select %p123, %s16, 0
        %s125 = sadd.s32 %s124, %s122
        %s126 = smul.addr %s125, 8
        %s127 = scalar_lea.vmem %s0, %s126
        %s128 = smul.u32 8, %s15
      $region24: #{graph_convolution.3} parent=19 // pred_fallthru
        _
    $region20: #{graph_convolution.3} parent=5 // pred_fallthru
      _
    %p129 = scmp.le.s32.totalorder 1, %s8
    %p130 = scmp.lt.s32.totalorder %s8, 3
    %p131 = pnand %p129, %p130
    %p132 = pneg %p131
    // Predicated region
    $region25: #{graph_convolution.3} parent=5 // pred_check
      _
    $region26: #{graph_convolution.3} parent=5 // pred_check_branch
      %134 = sbr.rel (%p131) target = $region28
    $region27: #{graph_convolution.3} parent=5 // pred_region
      %s135 = ssub.s32 %s8, 1
      %s136 = smul.u32 8, %s17
      %p137 = scmp.lt.s32.totalorder %s136, 15
      %s138 = scalar_select %p137, %s136, 15
      %p139 = scmp.lt.s32.totalorder %s18, 0
      %s140 = scalar_select %p139, %s18, 0
      %s141 = sadd.s32 %s140, %s138
      %s142 = smul.addr %s141, 8
      %s143 = scalar_lea.vmem %s0, %s142
      %p144 = pneg %p48
      %p145 = pneg %p45
      %p146 = pneg %p69
      %p147 = pneg %p66
      %p148 = pneg %p95
      %p149 = pneg %p92
      %s150 = smul.u32 8, %s17
      %p151 = scmp.lt.s32.totalorder %s150, 15
      %s152 = scalar_select %p151, %s150, 15
      %s153 = smul.addr %s152, 8
      %s154 = scalar_lea.vmem %s2, %s153
      %s155 = smul.u32 8, %s17
      %p156 = scmp.lt.s32.totalorder %s155, 15
      %s157 = scalar_select %p156, %s155, 15
      %p158 = scmp.lt.s32.totalorder %s18, 0
      %s159 = scalar_select %p158, %s18, 0
      %s160 = sadd.s32 %s159, %s157
      %s161 = smul.addr %s160, 8
      %s162 = scalar_lea.vmem %s0, %s161
      %s163 = smul.u32 8, %s17
      %s164 = smul.u32 8, %s17
      %p165 = scmp.lt.s32.totalorder %s164, 15
      %s166 = scalar_select %p165, %s164, 15
      %s167 = smul.addr %s166, 8
      %s168 = scalar_lea.vmem %s2, %s167
      %s169 = smul.u32 8, %s17
      %p170 = scmp.eq.s32.totalorder %s18, 0
      // Predicated region
      $region29: #{graph_convolution.3} parent=27 // pred_check
        %p171 = pneg %p170
      $region30: #{graph_convolution.3} parent=27 // pred_check_branch
        %173 = sbr.rel (%p171) target = $region32
      $region31: #{graph_convolution.3} parent=27 // pred_region
        %174 = vst [vmem:[%s168] sm:$0xff] 0.0
        %175 = vst [vmem:[%s168 + $0x8] sm:$0xff] 0.0
        %176 = vst [vmem:[%s168 + $0x10] sm:$0xff] 0.0
        %177 = vst [vmem:[%s168 + $0x18] sm:$0xff] 0.0
        %178 = vst [vmem:[%s168 + $0x20] sm:$0xff] 0.0
        %179 = vst [vmem:[%s168 + $0x28] sm:$0xff] 0.0
        %180 = vst [vmem:[%s168 + $0x30] sm:$0xff] 0.0
        %181 = vst [vmem:[%s168 + $0x38] sm:$0xff] 0.0
      $region32: #{graph_convolution.3} parent=27 // pred_fallthru
        _
      %s182 = smul.u32 %s18, 128
      %s183 = scalar_lea.vmem %s1, %s182
      %v184 = vld [vmem:[%s183] sm:$0xff]
      %v185 = vld [vmem:[%s183 + $0x8] sm:$0xff]
      %v186 = vld [vmem:[%s183 + $0x10] sm:$0xff]
      %v187 = vld [vmem:[%s183 + $0x18] sm:$0xff]
      %v188 = vld [vmem:[%s183 + $0x20] sm:$0xff]
      %v189 = vld [vmem:[%s183 + $0x28] sm:$0xff]
      %v190 = vld [vmem:[%s183 + $0x30] sm:$0xff]
      %v191 = vld [vmem:[%s183 + $0x38] sm:$0xff]
      %v192 = vld [vmem:[%s183 + $0x40] sm:$0xff]
      %v193 = vld [vmem:[%s183 + $0x48] sm:$0xff]
      %v194 = vld [vmem:[%s183 + $0x50] sm:$0xff]
      %v195 = vld [vmem:[%s183 + $0x58] sm:$0xff]
      %v196 = vld [vmem:[%s183 + $0x60] sm:$0xff]
      %v197 = vld [vmem:[%s183 + $0x68] sm:$0xff]
      %v198 = vld [vmem:[%s183 + $0x70] sm:$0xff]
      %v199 = vld [vmem:[%s183 + $0x78] sm:$0xff]
      %v200 = vld [vmem:[%s168] sm:$0xff]
      %v201 = vld [vmem:[%s168 + $0x8] sm:$0xff]
      %v202 = vld [vmem:[%s168 + $0x10] sm:$0xff]
      %v203 = vld [vmem:[%s168 + $0x18] sm:$0xff]
      %v204 = vld [vmem:[%s168 + $0x20] sm:$0xff]
      %v205 = vld [vmem:[%s168 + $0x28] sm:$0xff]
      %v206 = vld [vmem:[%s168 + $0x30] sm:$0xff]
      %v207 = vld [vmem:[%s168 + $0x38] sm:$0xff]
      %v208 = vld [vmem:[%s162] sm:$0xff]
      %v209 = vld [vmem:[%s162 + $0x8] sm:$0xff]
      %v210 = vld [vmem:[%s162 + $0x10] sm:$0xff]
      %v211 = vld [vmem:[%s162 + $0x18] sm:$0xff]
      %v212 = vld [vmem:[%s162 + $0x20] sm:$0xff]
      %v213 = vld [vmem:[%s162 + $0x28] sm:$0xff]
      %v214 = vld [vmem:[%s162 + $0x30] sm:$0xff]
      %v215 = vld [vmem:[%s162 + $0x38] sm:$0xff]
      %216 = vmatprep.subr.mxu0 0.0
      %217 = vmatpush1.msra.mxu0 %v184
      %218 = vmatprep.subr.mxu0 0.0
      %219 = vmatpush1.msra.mxu0 %v185
      %220 = vmatprep.subr.mxu0 0.0
      %221 = vmatpush1.msra.mxu0 %v186
      %222 = vmatprep.subr.mxu0 0.0
      %223 = vmatpush1.msra.mxu0 %v187
      %224 = vmatprep.subr.mxu0 0.0
      %225 = vmatpush1.msra.mxu0 %v188
      %226 = vmatprep.subr.mxu0 0.0
      %227 = vmatpush1.msra.mxu0 %v189
      %228 = vmatprep.subr.mxu0 0.0
      %229 = vmatpush1.msra.mxu0 %v190
      %230 = vmatprep.subr.mxu0 0.0
      %231 = vmatpush1.msra.mxu0 %v191
      %232 = vmatprep.subr.mxu0 0.0
      %233 = vmatpush1.msra.mxu0 %v192
      %234 = vmatprep.subr.mxu0 0.0
      %235 = vmatpush1.msra.mxu0 %v193
      %236 = vmatprep.subr.mxu0 0.0
      %237 = vmatpush1.msra.mxu0 %v194
      %238 = vmatprep.subr.mxu0 0.0
      %239 = vmatpush1.msra.mxu0 %v195
      %240 = vmatprep.subr.mxu0 0.0
      %241 = vmatpush1.msra.mxu0 %v196
      %242 = vmatprep.subr.mxu0 0.0
      %243 = vmatpush1.msra.mxu0 %v197
      %244 = vmatprep.subr.mxu0 0.0
      %245 = vmatpush1.msra.mxu0 %v198
      %246 = vmatprep.subr.mxu0 0.0
      %247 = vmatpush1.msra.mxu0 %v199
      %248 = vmatprep.subr.mxu0 0.0
      %249 = vmatpush1.msra.mxu0 0.0
      %250 = vmatprep.subr.mxu0 0.0
      %251 = vmatpush1.msra.mxu0 0.0
      %252 = vmatprep.subr.mxu0 0.0
      %253 = vmatpush1.msra.mxu0 0.0
      %254 = vmatprep.subr.mxu0 0.0
      %255 = vmatpush1.msra.mxu0 0.0
      %256 = vmatprep.subr.mxu0 0.0
      %257 = vmatpush1.msra.mxu0 0.0
      %258 = vmatprep.subr.mxu0 0.0
      %259 = vmatpush1.msra.mxu0 0.0
      %260 = vmatprep.subr.mxu0 0.0
      %261 = vmatpush1.msra.mxu0 0.0
      %262 = vmatprep.subr.mxu0 0.0
      %263 = vmatpush1.msra.mxu0 0.0
      %264 = vmatprep.subr.mxu0 0.0
      %265 = vmatpush1.msra.mxu0 0.0
      %266 = vmatprep.subr.mxu0 0.0
      %267 = vmatpush1.msra.mxu0 0.0
      %268 = vmatprep.subr.mxu0 0.0
      %269 = vmatpush1.msra.mxu0 0.0
      %270 = vmatprep.subr.mxu0 0.0
      %271 = vmatpush1.msra.mxu0 0.0
      %272 = vmatprep.subr.mxu0 0.0
      %273 = vmatpush1.msra.mxu0 0.0
      %274 = vmatprep.subr.mxu0 0.0
      %275 = vmatpush1.msra.mxu0 0.0
      %276 = vmatprep.subr.mxu0 0.0
      %277 = vmatpush1.msra.mxu0 0.0
      %278 = vmatprep.subr.mxu0 0.0
      %279 = vmatpush1.msra.mxu0 0.0
      %280 = vmatprep.mubr.f32.mxu0 0.0
      %281 = vmatmul.mubr.f32.gmra.mrb[0].mxu0 %v208
      %v282 = vpop.f32.mrb[0].mxu0
      %v283 = vadd.f32 0.0, %v282
      %v284 = vpop.f32.mrb[0].mxu0
      %285 = vmatprep.mubr.f32.mxu0 0.0
      %286 = vmatmul.mubr.f32.gmra.mrb[0].mxu0 %v209
      %v287 = vpop.f32.mrb[0].mxu0
      %v288 = vadd.f32 0.0, %v287
      %v289 = vpop.f32.mrb[0].mxu0
      %290 = vmatprep.mubr.f32.mxu0 0.0
      %291 = vmatmul.mubr.f32.gmra.mrb[0].mxu0 %v210
      %v292 = vpop.f32.mrb[0].mxu0
      %v293 = vadd.f32 0.0, %v292
      %v294 = vpop.f32.mrb[0].mxu0
      %295 = vmatprep.mubr.f32.mxu0 0.0
      %296 = vmatmul.mubr.f32.gmra.mrb[0].mxu0 %v211
      %v297 = vpop.f32.mrb[0].mxu0
      %v298 = vadd.f32 0.0, %v297
      %v299 = vpop.f32.mrb[0].mxu0
      %300 = vmatprep.mubr.f32.mxu0 0.0
      %301 = vmatmul.mubr.f32.gmra.mrb[0].mxu0 %v212
      %v302 = vpop.f32.mrb[0].mxu0
      %v303 = vadd.f32 0.0, %v302
      %v304 = vpop.f32.mrb[0].mxu0
      %305 = vmatprep.mubr.f32.mxu0 0.0
      %306 = vmatmul.mubr.f32.gmra.mrb[0].mxu0 %v213
      %v307 = vpop.f32.mrb[0].mxu0
      %v308 = vadd.f32 0.0, %v307
      %v309 = vpop.f32.mrb[0].mxu0
      %310 = vmatprep.mubr.f32.mxu0 0.0
      %311 = vmatmul.mubr.f32.gmra.mrb[0].mxu0 %v214
      %v312 = vpop.f32.mrb[0].mxu0
      %v313 = vadd.f32 0.0, %v312
      %v314 = vpop.f32.mrb[0].mxu0
      %315 = vmatprep.mubr.f32.mxu0 0.0
      %316 = vmatmul.mubr.f32.gmra.mrb[0].mxu0 %v215
      %v317 = vpop.f32.mrb[0].mxu0
      %v318 = vadd.f32 0.0, %v317
      %v319 = vpop.f32.mrb[0].mxu0
      %320 = vdwg.mxu0
      %v321 = vadd.f32 %v200, %v283
      %v322 = vadd.f32 %v201, %v288
      %v323 = vadd.f32 %v202, %v293
      %v324 = vadd.f32 %v203, %v298
      %v325 = vadd.f32 %v204, %v303
      %v326 = vadd.f32 %v205, %v308
      %v327 = vadd.f32 %v206, %v313
      %v328 = vadd.f32 %v207, %v318
      %329 = vst [vmem:[%s168] sm:$0xff] %v321
      %330 = vst [vmem:[%s168 + $0x8] sm:$0xff] %v322
      %331 = vst [vmem:[%s168 + $0x10] sm:$0xff] %v323
      %332 = vst [vmem:[%s168 + $0x18] sm:$0xff] %v324
      %333 = vst [vmem:[%s168 + $0x20] sm:$0xff] %v325
      %334 = vst [vmem:[%s168 + $0x28] sm:$0xff] %v326
      %335 = vst [vmem:[%s168 + $0x30] sm:$0xff] %v327
      %336 = vst [vmem:[%s168 + $0x38] sm:$0xff] %v328
      %s337 = smul.u32 8, %s17
      %p338 = scmp.lt.s32.totalorder %s337, 15
      %s339 = scalar_select %p338, %s337, 15
      %s340 = smul.addr %s339, 8
      %s341 = scalar_lea.vmem %s2, %s340
      // Predicated region
      $region33: #{graph_convolution.3} parent=27 // pred_check
        %p342 = pneg %p92
      $region34: #{graph_convolution.3} parent=27 // pred_check_branch
        %344 = sbr.rel (%p342) target = $region36
      $region35: #{graph_convolution.3} parent=27 // pred_region
        %s345 = smul.u32 8, %s17
      $region36: #{graph_convolution.3} parent=27 // pred_fallthru
        _
    $region28: #{graph_convolution.3} parent=5 // pred_fallthru
      _
    %p346 = scmp.le.s32.totalorder 2, %s8
    // Predicated region
    $region37: #{graph_convolution.3} parent=5 // pred_check
      %p347 = pneg %p346
    $region38: #{graph_convolution.3} parent=5 // pred_check_branch
      %349 = sbr.rel (%p347) target = $region40
    $region39: #{graph_convolution.3} parent=5 // pred_region
      %s350 = ssub.s32 %s8, 2
      // Predicated region
      $region41: #{graph_convolution.3} parent=39 // pred_check
        %p351 = pneg %p98
      $region42: #{graph_convolution.3} parent=39 // pred_check_branch
        %353 = sbr.rel (%p351) target = $region44
      $region43: #{graph_convolution.3} parent=39 // pred_region
        %s354 = smul.u32 8, %s19
        %p355 = scmp.lt.s32.totalorder %s354, 15
        %s356 = scalar_select %p355, %s354, 15
        %s357 = smul.addr %s356, 8
        %s358 = scalar_lea.vmem %s2, %s357
      $region44: #{graph_convolution.3} parent=39 // pred_fallthru
        _
    $region40: #{graph_convolution.3} parent=5 // pred_fallthru
      _
  $region6: #{graph_convolution.3} parent=0 // loop_footer
    %s12 = sadd.s32 1, %s8
  $region7: #{graph_convolution.3} parent=0 // loop_footer_branch
    %7 = sbr.rel target = $region3
  $region8: #{graph_convolution.3} parent=0 // loop_exit
    _

// kernel: graph_convolution.2
$region0: #{graph_convolution.2}
  #allocation0 [shape = 'u32[]', space=smem, size = 0x4, offset = 0x4, fixed_abs, tag = 'smem constant byte address 0x4 - core index']
  #allocation1 [shape = 'u32[144,128]{1,0:T(1,128)}', space=vmem, size = 0x12000, scoped, tag = 'internal scratch']
  %s0 = inlined_call_operand.vmem [shape: f32[128,32], index: 0, kind: input, shape index: {}]
  %s1 = inlined_call_operand.vmem [shape: f32[32,128], index: 1, kind: input, shape index: {}]
  %s2 = inlined_call_operand.vmem [shape: f32[128,128], index: 2, kind: output, shape index: {}]
  %s3 = sld [smem:[#allocation0]]
  $region41: #{graph_convolution.2} parent=0
    _
  %s5 = ssub.s32 1, %s3
  %s6 = scalar_select 0, %s5, %s3
  loop: start=0, step=1, limit=4
  $region2: #{graph_convolution.2} parent=0 // loop_pre_header
    _
  $region3: #{graph_convolution.2} parent=0 // loop_header
    %s8 = sphi 0, %s12
    %p9 = scmp.ge.s32.totalorder %s8, 4
    %s18 = sphi 0, %s20
    %s21 = sphi 0, %s18
    %s22 = sphi 0, %s21
    %s38 = sphi 0, %s22
    %s42 = sphi 0, %s42
    %s44 = sphi 0, %s42
    %s45 = sphi 0, %s44
    %s59 = sphi 0, %s45
    %s65 = sphi 0, %s67
    %s68 = sphi 0, %s65
    %s69 = sphi 0, %s68
    %s85 = sphi 0, %s69
  $region4: #{graph_convolution.2} parent=0 // loop_header_branch
    %11 = sbr.rel (%p9) target = $region8
  $region5: #{graph_convolution.2} parent=0 // loop_body
    %s13 = ssub.s32 %s8, 1
    %s14 = ssub.s32 %s8, 2
    %s15 = sadd.s32 %s8, 1
    %s16 = ssub.s32 %s8, %s15
    %p17 = scmp.eq.s32.totalorder %s16, 0
    %s19 = sadd.s32 %s18, 1
    %s20 = scalar_select %p17, %s18, %s19
    %p23 = pneg %p17
    %p24 = scmp.eq.s32.totalorder %s8, 1
    %p25 = por %p23, %p24
    %p26 = scmp.ne.s32.totalorder %s18, %s21
    %p27 = scmp.eq.s32.totalorder %s8, 0
    %p28 = por %p26, %p27
    %p29 = scmp.ne.s32.totalorder %s18, %s21
    %p30 = scmp.eq.s32.totalorder %s13, 1
    %p31 = por %p29, %p30
    %p32 = scmp.ne.s32.totalorder %s21, %s22
    %p33 = scmp.eq.s32.totalorder %s13, 0
    %p34 = por %p32, %p33
    %p35 = scmp.ne.s32.totalorder %s21, %s22
    %p36 = scmp.eq.s32.totalorder %s14, 1
    %p37 = por %p35, %p36
    %p39 = scmp.ne.s32.totalorder %s22, %s38
    %p40 = scmp.eq.s32.totalorder %s14, 0
    %p41 = por %p39, %p40
    %s43 = sadd.s32 %s42, 1
    %p46 = scmp.eq.s32.totalorder %s8, 1
    %p47 = scmp.ne.s32.totalorder %s42, %s44
    %p48 = scmp.eq.s32.totalorder %s8, 0
    %p49 = por %p47, %p48
    %p50 = scmp.ne.s32.totalorder %s42, %s44
    %p51 = scmp.eq.s32.totalorder %s13, 1
    %p52 = por %p50, %p51
    %p53 = scmp.ne.s32.totalorder %s44, %s45
    %p54 = scmp.eq.s32.totalorder %s13, 0
    %p55 = por %p53, %p54
    %p56 = scmp.ne.s32.totalorder %s44, %s45
    %p57 = scmp.eq.s32.totalorder %s14, 1
    %p58 = por %p56, %p57
    %p60 = scmp.ne.s32.totalorder %s45, %s59
    %p61 = scmp.eq.s32.totalorder %s14, 0
    %p62 = por %p60, %p61
    %s63 = ssub.s32 %s8, %s15
    %p64 = scmp.eq.s32.totalorder %s63, 0
    %s66 = sadd.s32 %s65, 1
    %s67 = scalar_select %p64, %s65, %s66
    %p70 = pneg %p64
    %p71 = scmp.eq.s32.totalorder %s8, 1
    %p72 = por %p70, %p71
    %p73 = scmp.ne.s32.totalorder %s65, %s68
    %p74 = scmp.eq.s32.totalorder %s8, 0
    %p75 = por %p73, %p74
    %p76 = scmp.ne.s32.totalorder %s65, %s68
    %p77 = scmp.eq.s32.totalorder %s13, 1
    %p78 = por %p76, %p77
    %p79 = scmp.ne.s32.totalorder %s68, %s69
    %p80 = scmp.eq.s32.totalorder %s13, 0
    %p81 = por %p79, %p80
    %p82 = scmp.ne.s32.totalorder %s68, %s69
    %p83 = scmp.eq.s32.totalorder %s14, 1
    %p84 = por %p82, %p83
    %p86 = scmp.ne.s32.totalorder %s69, %s85
    %p87 = scmp.eq.s32.totalorder %s14, 0
    %p88 = por %p86, %p87
    %p89 = scmp.le.s32.totalorder 1, %s8
    %p90 = scmp.lt.s32.totalorder %s8, 3
    %p91 = pnand %p89, %p90
    %p92 = pneg %p91
    // Predicated region
    $region9: #{graph_convolution.2} parent=5 // pred_check
      _
    $region10: #{graph_convolution.2} parent=5 // pred_check_branch
      %94 = sbr.rel (%p91) target = $region12
    $region11: #{graph_convolution.2} parent=5 // pred_region
      %s95 = ssub.s32 %s8, 1
      // Predicated region
      $region13: #{graph_convolution.2} parent=11 // pred_check
        %p96 = pneg %p55
      $region14: #{graph_convolution.2} parent=11 // pred_check_branch
        %98 = sbr.rel (%p96) target = $region16
      $region15: #{graph_convolution.2} parent=11 // pred_region
        _
      $region16: #{graph_convolution.2} parent=11 // pred_fallthru
        _
    $region12: #{graph_convolution.2} parent=5 // pred_fallthru
      _
    %p99 = scmp.lt.s32.totalorder %s8, 2
    // Predicated region
    $region17: #{graph_convolution.2} parent=5 // pred_check
      %p100 = pneg %p99
    $region18: #{graph_convolution.2} parent=5 // pred_check_branch
      %102 = sbr.rel (%p100) target = $region20
    $region19: #{graph_convolution.2} parent=5 // pred_region
      // Predicated region
      $region21: #{graph_convolution.2} parent=19 // pred_check
        %p103 = pneg %p28
      $region22: #{graph_convolution.2} parent=19 // pred_check_branch
        %105 = sbr.rel (%p103) target = $region24
      $region23: #{graph_convolution.2} parent=19 // pred_region
        %s106 = smul.u32 8, %s8
        %p107 = scmp.lt.s32.totalorder %s106, 15
        %s108 = scalar_select %p107, %s106, 15
        %s109 = smul.addr %s108, 8
        %s110 = scalar_lea.vmem %s0, %s109
        %s111 = smul.u32 8, %s8
      $region24: #{graph_convolution.2} parent=19 // pred_fallthru
        _
    $region20: #{graph_convolution.2} parent=5 // pred_fallthru
      _
    %p112 = scmp.le.s32.totalorder 1, %s8
    %p113 = scmp.lt.s32.totalorder %s8, 3
    %p114 = pnand %p112, %p113
    %p115 = pneg %p114
    // Predicated region
    $region25: #{graph_convolution.2} parent=5 // pred_check
      _
    $region26: #{graph_convolution.2} parent=5 // pred_check_branch
      %117 = sbr.rel (%p114) target = $region28
    $region27: #{graph_convolution.2} parent=5 // pred_region
      %s118 = ssub.s32 %s8, 1
      %s119 = smul.u32 8, %s13
      %p120 = scmp.lt.s32.totalorder %s119, 15
      %s121 = scalar_select %p120, %s119, 15
      %s122 = smul.addr %s121, 8
      %s123 = scalar_lea.vmem %s0, %s122
      %p124 = pneg %p34
      %p125 = pneg %p31
      %p126 = pneg %p55
      %p127 = pneg %p52
      %p128 = pneg %p81
      %p129 = pneg %p78
      %s130 = smul.u32 8, %s13
      %p131 = scmp.lt.s32.totalorder %s130, 15
      %s132 = scalar_select %p131, %s130, 15
      %s133 = smul.addr %s132, 8
      %s134 = scalar_lea.vmem %s2, %s133
      %s135 = smul.u32 8, %s13
      %p136 = scmp.lt.s32.totalorder %s135, 15
      %s137 = scalar_select %p136, %s135, 15
      %s138 = smul.addr %s137, 8
      %s139 = scalar_lea.vmem %s0, %s138
      %s140 = smul.u32 8, %s13
      %s141 = smul.u32 8, %s13
      %p142 = scmp.lt.s32.totalorder %s141, 15
      %s143 = scalar_select %p142, %s141, 15
      %s144 = smul.addr %s143, 8
      %s145 = scalar_lea.vmem %s2, %s144
      %s146 = smul.u32 8, %s13
      %v147 = vld [vmem:[%s139] sm:$0xff]
      %v148 = vld [vmem:[%s139 + $0x8] sm:$0xff]
      %v149 = vld [vmem:[%s139 + $0x10] sm:$0xff]
      %v150 = vld [vmem:[%s139 + $0x18] sm:$0xff]
      %v151 = vld [vmem:[%s139 + $0x20] sm:$0xff]
      %v152 = vld [vmem:[%s139 + $0x28] sm:$0xff]
      %v153 = vld [vmem:[%s139 + $0x30] sm:$0xff]
      %v154 = vld [vmem:[%s139 + $0x38] sm:$0xff]
      %v155 = vld [vmem:[%s1] sm:$0xff]
      %v156 = vld [vmem:[%s1 + $0x8] sm:$0xff]
      %v157 = vld [vmem:[%s1 + $0x10] sm:$0xff]
      %v158 = vld [vmem:[%s1 + $0x18] sm:$0xff]
      %vm159 = vcmask 261120
      %v161 = vsel %vm159, %v147, 0
      %v164 = vsel %vm159, %v148, 0
      %v167 = vsel %vm159, %v149, 0
      %v170 = vsel %vm159, %v150, 0
      %v173 = vsel %vm159, %v151, 0
      %v176 = vsel %vm159, %v152, 0
      %v179 = vsel %vm159, %v153, 0
      %v182 = vsel %vm159, %v154, 0
      %184 = vmatprep.subr.mxu0 0.0
      %185 = vmatpush1.msra.mxu0 %v155
      %186 = vmatprep.subr.mxu0 0.0
      %187 = vmatpush1.msra.mxu0 %v156
      %188 = vmatprep.subr.mxu0 0.0
      %189 = vmatpush1.msra.mxu0 %v157
      %190 = vmatprep.subr.mxu0 0.0
      %191 = vmatpush1.msra.mxu0 %v158
      %192 = vmatprep.subr.mxu0 0.0
      %193 = vmatpush1.msra.mxu0 0.0
      %194 = vmatprep.subr.mxu0 0.0
      %195 = vmatpush1.msra.mxu0 0.0
      %196 = vmatprep.subr.mxu0 0.0
      %197 = vmatpush1.msra.mxu0 0.0
      %198 = vmatprep.subr.mxu0 0.0
      %199 = vmatpush1.msra.mxu0 0.0
      %200 = vmatprep.subr.mxu0 0.0
      %201 = vmatpush1.msra.mxu0 0.0
      %202 = vmatprep.subr.mxu0 0.0
      %203 = vmatpush1.msra.mxu0 0.0
      %204 = vmatprep.subr.mxu0 0.0
      %205 = vmatpush1.msra.mxu0 0.0
      %206 = vmatprep.subr.mxu0 0.0
      %207 = vmatpush1.msra.mxu0 0.0
      %208 = vmatprep.subr.mxu0 0.0
      %209 = vmatpush1.msra.mxu0 0.0
      %210 = vmatprep.subr.mxu0 0.0
      %211 = vmatpush1.msra.mxu0 0.0
      %212 = vmatprep.subr.mxu0 0.0
      %213 = vmatpush1.msra.mxu0 0.0
      %214 = vmatprep.subr.mxu0 0.0
      %215 = vmatpush1.msra.mxu0 0.0
      %216 = vmatprep.subr.mxu0 0.0
      %217 = vmatpush1.msra.mxu0 0.0
      %218 = vmatprep.subr.mxu0 0.0
      %219 = vmatpush1.msra.mxu0 0.0
      %220 = vmatprep.subr.mxu0 0.0
      %221 = vmatpush1.msra.mxu0 0.0
      %222 = vmatprep.subr.mxu0 0.0
      %223 = vmatpush1.msra.mxu0 0.0
      %224 = vmatprep.subr.mxu0 0.0
      %225 = vmatpush1.msra.mxu0 0.0
      %226 = vmatprep.subr.mxu0 0.0
      %227 = vmatpush1.msra.mxu0 0.0
      %228 = vmatprep.subr.mxu0 0.0
      %229 = vmatpush1.msra.mxu0 0.0
      %230 = vmatprep.subr.mxu0 0.0
      %231 = vmatpush1.msra.mxu0 0.0
      %232 = vmatprep.subr.mxu0 0.0
      %233 = vmatpush1.msra.mxu0 0.0
      %234 = vmatprep.subr.mxu0 0.0
      %235 = vmatpush1.msra.mxu0 0.0
      %236 = vmatprep.subr.mxu0 0.0
      %237 = vmatpush1.msra.mxu0 0.0
      %238 = vmatprep.subr.mxu0 0.0
      %239 = vmatpush1.msra.mxu0 0.0
      %240 = vmatprep.subr.mxu0 0.0
      %241 = vmatpush1.msra.mxu0 0.0
      %242 = vmatprep.subr.mxu0 0.0
      %243 = vmatpush1.msra.mxu0 0.0
      %244 = vmatprep.subr.mxu0 0.0
      %245 = vmatpush1.msra.mxu0 0.0
      %246 = vmatprep.subr.mxu0 0.0
      %247 = vmatpush1.msra.mxu0 0.0
      %248 = vmatprep.mubr.f32.mxu0 0.0
      %249 = vmatmul.mubr.f32.gmra.mrb[0].mxu0 %v161
      %v250 = vpop.f32.mrb[0].mxu0
      %v251 = vadd.f32 0.0, %v250
      %v252 = vpop.f32.mrb[0].mxu0
      %253 = vmatprep.mubr.f32.mxu0 0.0
      %254 = vmatmul.mubr.f32.gmra.mrb[0].mxu0 %v164
      %v255 = vpop.f32.mrb[0].mxu0
      %v256 = vadd.f32 0.0, %v255
      %v257 = vpop.f32.mrb[0].mxu0
      %258 = vmatprep.mubr.f32.mxu0 0.0
      %259 = vmatmul.mubr.f32.gmra.mrb[0].mxu0 %v167
      %v260 = vpop.f32.mrb[0].mxu0
      %v261 = vadd.f32 0.0, %v260
      %v262 = vpop.f32.mrb[0].mxu0
      %263 = vmatprep.mubr.f32.mxu0 0.0
      %264 = vmatmul.mubr.f32.gmra.mrb[0].mxu0 %v170
      %v265 = vpop.f32.mrb[0].mxu0
      %v266 = vadd.f32 0.0, %v265
      %v267 = vpop.f32.mrb[0].mxu0
      %268 = vmatprep.mubr.f32.mxu0 0.0
      %269 = vmatmul.mubr.f32.gmra.mrb[0].mxu0 %v173
      %v270 = vpop.f32.mrb[0].mxu0
      %v271 = vadd.f32 0.0, %v270
      %v272 = vpop.f32.mrb[0].mxu0
      %273 = vmatprep.mubr.f32.mxu0 0.0
      %274 = vmatmul.mubr.f32.gmra.mrb[0].mxu0 %v176
      %v275 = vpop.f32.mrb[0].mxu0
      %v276 = vadd.f32 0.0, %v275
      %v277 = vpop.f32.mrb[0].mxu0
      %278 = vmatprep.mubr.f32.mxu0 0.0
      %279 = vmatmul.mubr.f32.gmra.mrb[0].mxu0 %v179
      %v280 = vpop.f32.mrb[0].mxu0
      %v281 = vadd.f32 0.0, %v280
      %v282 = vpop.f32.mrb[0].mxu0
      %283 = vmatprep.mubr.f32.mxu0 0.0
      %284 = vmatmul.mubr.f32.gmra.mrb[0].mxu0 %v182
      %v285 = vpop.f32.mrb[0].mxu0
      %v286 = vadd.f32 0.0, %v285
      %v287 = vpop.f32.mrb[0].mxu0
      %288 = vdwg.mxu0
      %289 = vst [vmem:[%s145] sm:$0xff] %v251
      %290 = vst [vmem:[%s145 + $0x8] sm:$0xff] %v256
      %291 = vst [vmem:[%s145 + $0x10] sm:$0xff] %v261
      %292 = vst [vmem:[%s145 + $0x18] sm:$0xff] %v266
      %293 = vst [vmem:[%s145 + $0x20] sm:$0xff] %v271
      %294 = vst [vmem:[%s145 + $0x28] sm:$0xff] %v276
      %295 = vst [vmem:[%s145 + $0x30] sm:$0xff] %v281
      %296 = vst [vmem:[%s145 + $0x38] sm:$0xff] %v286
      %s297 = smul.u32 8, %s13
      %p298 = scmp.lt.s32.totalorder %s297, 15
      %s299 = scalar_select %p298, %s297, 15
      %s300 = smul.addr %s299, 8
      %s301 = scalar_lea.vmem %s2, %s300
      // Predicated region
      $region29: #{graph_convolution.2} parent=27 // pred_check
        %p302 = pneg %p78
      $region30: #{graph_convolution.2} parent=27 // pred_check_branch
        %304 = sbr.rel (%p302) target = $region32
      $region31: #{graph_convolution.2} parent=27 // pred_region
        %s305 = smul.u32 8, %s13
      $region32: #{graph_convolution.2} parent=27 // pred_fallthru
        _
    $region28: #{graph_convolution.2} parent=5 // pred_fallthru
      _
    %p306 = scmp.le.s32.totalorder 2, %s8
    // Predicated region
    $region33: #{graph_convolution.2} parent=5 // pred_check
      %p307 = pneg %p306
    $region34: #{graph_convolution.2} parent=5 // pred_check_branch
      %309 = sbr.rel (%p307) target = $region36
    $region35: #{graph_convolution.2} parent=5 // pred_region
      %s310 = ssub.s32 %s8, 2
      // Predicated region
      $region37: #{graph_convolution.2} parent=35 // pred_check
        %p311 = pneg %p84
      $region38: #{graph_convolution.2} parent=35 // pred_check_branch
        %313 = sbr.rel (%p311) target = $region40
      $region39: #{graph_convolution.2} parent=35 // pred_region
        %s314 = smul.u32 8, %s14
        %p315 = scmp.lt.s32.totalorder %s314, 15
        %s316 = scalar_select %p315, %s314, 15
        %s317 = smul.addr %s316, 8
        %s318 = scalar_lea.vmem %s2, %s317
      $region40: #{graph_convolution.2} parent=35 // pred_fallthru
        _
    $region36: #{graph_convolution.2} parent=5 // pred_fallthru
      _
  $region6: #{graph_convolution.2} parent=0 // loop_footer
    %s12 = sadd.s32 1, %s8
  $region7: #{graph_convolution.2} parent=0 // loop_footer_branch
    %7 = sbr.rel target = $region3
  $region8: #{graph_convolution.2} parent=0 // loop_exit
    _

</llo_original>
